<compile_context>
chip_gen: v6e
topology: v6e:2x2x1
jax: 0.10.0
libtpu: 0.0.40
codegen_flags: <defaults>
</compile_context>

<pallas_src>
import functools

import jax
import jax.numpy as jnp
from jax import lax
from jax.experimental import pallas as pl
from jax.experimental.pallas import tpu as pltpu


def _dual_pool_kernel(x_ref, o_ref, *, reduce_size):
    r = reduce_size
    tb, H, W = x_ref.shape
    w_out = W // r
    h_out = H // r

    x = x_ref[...]                                        # (TB, H, W)

    # pool_h: reduce over full height (sublane axis)  -> (TB, W), lane-dense.
    col_sum = jnp.sum(x, axis=1, dtype=jnp.float32)
    # pool_w: reduce over full width (lane axis, XLU) -> (TB, H), lane-dense.
    row_sum = jnp.sum(x, axis=2, dtype=jnp.float32)

    if r == 1:
        oh = col_sum * (1.0 / H)                          # (TB, W_out)
        ow = row_sum * (1.0 / W)                          # (TB, H_out)
    else:
        # Window-sum of size r via a constant {0,1} pooling matrix on the MXU
        # (free bundle slot in this memory-bound kernel; avoids reshapes that
        # regroup the lane axis).
        def _pool_mat(n, n_out):
            src = lax.broadcasted_iota(jnp.int32, (n, n_out), 0)
            dst = lax.broadcasted_iota(jnp.int32, (n, n_out), 1)
            return (src // r == dst).astype(jnp.float32)

        oh = jnp.dot(col_sum, _pool_mat(W, w_out),
                     preferred_element_type=jnp.float32) * (1.0 / (H * r))
        ow = jnp.dot(row_sum, _pool_mat(H, h_out),
                     preferred_element_type=jnp.float32) * (1.0 / (W * r))

    # Fused lane-dense output slab [pool_h | pool_w], single full-ref store.
    o_ref[...] = jnp.concatenate(
        [oh.astype(o_ref.dtype), ow.astype(o_ref.dtype)], axis=-1)


def dual_spanning_avg_pool(x, reduce_size=1):
    """Pallas implementation of _DualSpanningAvgPool.forward.

    Args:
      x: (B, C, rows, cols) array, NCHW layout (matches the PyTorch module).
      reduce_size: pooling reduction size (window along the non-spanning dim).

    Returns:
      (B, C*(cols//reduce_size) + C*(rows//reduce_size)) array.
    """
    B, C, H, W = x.shape
    r = reduce_size
    assert H % r == 0 and W % r == 0
    W_out = W // r
    H_out = H // r
    N = B * C
    D = W_out + H_out

    xf = x.reshape(N, H, W)

    # --- Block sizing: batch planes per grid step so the input DMA streams.
    # Target ~4 MiB per input buffer (auto-pipeline double-buffers it, so
    # ~8 MiB of VMEM for the input path) — comfortably within v5e's 16 MiB
    # scoped default and v7x's 32 MiB default / 64 MiB physical.
    plane_bytes = H * W * x.dtype.itemsize
    target_bytes = 4 * 1024 * 1024
    tb = max(1, target_bytes // plane_bytes)
    if tb >= N:
        tb = N
        # Keep >=2 grid steps on larger problems so megacore (v7x, 2 TCs)
        # can shard the "parallel" grid axis.
        if N >= 16:
            tb = min(N, (((N + 1) // 2) + 7) // 8 * 8)
    else:
        tb = max(8, (tb // 8) * 8)  # sublane-aligned 2-D output block
    grid = (pl.cdiv(N, tb),)
    # Note: the grid may not evenly divide N. Each output row depends only on
    # its own input plane, so the padded (out-of-bounds) rows of the last block
    # are harmless and their stores are masked by Pallas.

    kernel = functools.partial(_dual_pool_kernel, reduce_size=r)

    in_bytes = N * H * W * x.dtype.itemsize
    out_bytes = N * D * x.dtype.itemsize
    cost = pl.CostEstimate(
        flops=2 * N * H * W,
        transcendentals=0,
        bytes_accessed=in_bytes + out_bytes,
    )

    out = pl.pallas_call(
        kernel,
        out_shape=jax.ShapeDtypeStruct((N, D), x.dtype),
        grid=grid,
        in_specs=[pl.BlockSpec((tb, H, W), lambda i: (i, 0, 0))],
        out_specs=pl.BlockSpec((tb, D), lambda i: (i, 0)),
        compiler_params=pltpu.CompilerParams(
            dimension_semantics=("parallel",),
            vmem_limit_bytes=32 * 1024 * 1024,
        ),
        cost_estimate=cost,
    )(xf)

    # nn.Flatten() semantics: per batch, all channels of pool_h then all
    # channels of pool_w.  (b, c)-major rows reshape directly into that order.
    pooled_h = out[:, :W_out].reshape(B, C * W_out)
    pooled_w = out[:, W_out:].reshape(B, C * H_out)
    return jnp.concatenate([pooled_h, pooled_w], axis=-1)


def _reference(x, reduce_size=1):
    """Pure-JAX reference matching torch AvgPool2d semantics (stride==kernel)."""
    B, C, H, W = x.shape
    r = reduce_size
    ph = x.reshape(B, C, H, W // r, r).mean(axis=(2, 4)).reshape(B, -1)
    pw = x.reshape(B, C, H // r, r, W).mean(axis=(3, 4)).reshape(B, -1)
    return jnp.concatenate([ph, pw], axis=-1)


if __name__ == "__main__":
    key = jax.random.PRNGKey(0)
    B, C, rows, cols = 2, 4, 16, 16
    x = jax.random.normal(key, (B, C, rows, cols), dtype=jnp.float32)

    # Exercise both the r == 1 fast path and the r > 1 (MXU pooling) path.
    for r in (1, 2):
        out = jax.block_until_ready(dual_spanning_avg_pool(x, reduce_size=r))
        ref = _reference(x, reduce_size=r)
        assert out.shape == (B, C * (cols // r) + C * (rows // r)), out.shape
        assert jnp.allclose(out, ref, atol=1e-5, rtol=1e-5), f"mismatch (r={r})"

    print("KERNEL_OK")
</pallas_src>

<mosaic_0001>
module attributes {stable_mosaic.version = 11 : i64} {
  func.func @_dual_pool_kernel(%arg0: i32, %arg1: memref<8x16x16xf32, #tpu.memory_space<vmem>>, %arg2: memref<8x32xf32, #tpu.memory_space<vmem>>) attributes {dimension_semantics = [#tpu.dimension_semantics<parallel>], iteration_bounds = array<i64: 1>, scalar_prefetch = 0 : i64, scratch_operands = 0 : i64, tpu.core_type = #tpu.core_type<tc>, window_params = [{transform_indices = @transform_0, window_bounds = array<i64: 8, 16, 16>}, {transform_indices = @transform_1, window_bounds = array<i64: 8, 32>}]} {
    %c0 = arith.constant 0 : index
    %c0_0 = arith.constant 0 : index
    %c0_1 = arith.constant 0 : index
    %0 = vector.load %arg1[%c0, %c0_0, %c0_1] : memref<8x16x16xf32, #tpu.memory_space<vmem>>, vector<8x16x16xf32>
    %cst = arith.constant dense<0.000000e+00> : vector<8x16xf32>
    %1 = vector.multi_reduction <add>, %0, %cst [1] : vector<8x16x16xf32> to vector<8x16xf32>
    %cst_2 = arith.constant dense<0.000000e+00> : vector<8x16xf32>
    %2 = vector.multi_reduction <add>, %0, %cst_2 [2] : vector<8x16x16xf32> to vector<8x16xf32>
    %cst_3 = arith.constant 6.250000e-02 : f32
    %3 = vector.broadcast %cst_3 : f32 to vector<8x16xf32>
    %4 = arith.mulf %1, %3 : vector<8x16xf32>
    %cst_4 = arith.constant 6.250000e-02 : f32
    %5 = vector.broadcast %cst_4 : f32 to vector<8x16xf32>
    %6 = arith.mulf %2, %5 : vector<8x16xf32>
    %7 = tpu.concatenate %4, %6 in 1 : vector<8x16xf32>, vector<8x16xf32> -> vector<8x32xf32>
    %c0_5 = arith.constant 0 : index
    %c0_6 = arith.constant 0 : index
    %8 = vector.load %arg2[%c0_5, %c0_6] : memref<8x32xf32, #tpu.memory_space<vmem>>, vector<8x32xf32>
    tpu.vector_store %arg2[%c0_5, %c0_6], %7 {strides = array<i32>} : memref<8x32xf32, #tpu.memory_space<vmem>>, vector<8x32xf32>,
    return
  }
  func.func @transform_0(%arg0: i32) -> (i32, i32, i32) {
    %c0_i32 = arith.constant 0 : i32
    %c0_i32_0 = arith.constant 0 : i32
    %c0_i32_1 = arith.constant 0 : i32
    return %arg0, %c0_i32, %c0_i32_0 : i32, i32, i32
  }
  func.func @transform_1(%arg0: i32) -> (i32, i32) {
    %c0_i32 = arith.constant 0 : i32
    %c0_i32_0 = arith.constant 0 : i32
    return %arg0, %c0_i32 : i32, i32
  }
}

</mosaic_0001>

<llo_original>
// kernel: tpu_custom_call.1
$region0: #{tpu_custom_call.1}
  #allocation0 [shape = 'u32[]', space=smem, size = 0x4, offset = 0x4, fixed_abs, tag = 'smem constant byte address 0x4 - core index']
  #allocation1 [shape = 'u32[144,128]{1,0:T(1,128)}', space=vmem, size = 0x12000, scoped, tag = 'internal scratch']
  %s0 = inlined_call_operand.hbm [shape: f32[8,16,16], index: 0, kind: input, shape index: {}]
  %s1 = inlined_call_operand.hbm [shape: f32[8,32], index: 1, kind: output, shape index: {}]
  %s2 = sld [smem:[#allocation0]]
  $region18: #{tpu_custom_call.1} parent=0
    _
  %s4 = ssub.s32 1, %s2
  %s5 = scalar_select 0, %s4, %s2
  $region1: #{tpu_custom_call.1} parent=0
    #allocation2 [shape = 'u8[65536]{0}', space=vmem, size = 0x10000, scoped, tag = 'input window, operand 0, single buffered']
    #allocation3 [shape = 's32[1]{0}', space=sflag, size = 0x4, scoped, tag = 'scoped memory for tpu_custom_call.1']
    #allocation4 [shape = 's32[1]{0}', space=sflag, size = 0x4, scoped, tag = 'scoped memory for tpu_custom_call.1']
    #allocation5 [shape = 'u8[4096]{0}', space=vmem, size = 0x1000, scoped, tag = 'output window, operand 0, single buffered']
    %6 = vsyncpa [#allocation3], 0
    %7 = vsyncpa [#allocation4], 0
    // Predicated region
    $region2: #{tpu_custom_call.1} parent=1 // pred_check
      _
    $region3: #{tpu_custom_call.1} parent=1 // pred_check_branch
      %9 = sbr.rel (0) target = $region5
    $region4: #{tpu_custom_call.1} parent=1 // pred_region
      %s11 = ssub.s32 2048, 2048
      %12 = vsyncadd [#allocation3], %s11
      %s13 = sshll.u32 [#allocation2], 4
      %s14 = int_to_ptr.vmem [resolvable:$true] %s13
      %19 = dma.hbm_to_vmem [thread:$0]  %s0, 2048, %s14, [#allocation3], 128, 128, 8
    $region5: #{tpu_custom_call.1} parent=1 // pred_fallthru
      _
    // Predicated region
    $region6: #{tpu_custom_call.1} parent=1 // pred_check
      _
    $region7: #{tpu_custom_call.1} parent=1 // pred_check_branch
      %21 = sbr.rel (0) target = $region9
    $region8: #{tpu_custom_call.1} parent=1 // pred_region
      %22 = dma.done [#allocation3], 2048
    $region9: #{tpu_custom_call.1} parent=1 // pred_fallthru
      _
    %v23 = vld [vmem:[#allocation2] sm:$0xff]
    %v24 = vld [vmem:[#allocation2 + $0x8] sm:$0xff]
    %v25 = vld [vmem:[#allocation2 + $0x10] sm:$0xff]
    %v26 = vld [vmem:[#allocation2 + $0x18] sm:$0xff]
    %v27 = vld [vmem:[#allocation2 + $0x20] sm:$0xff]
    %v28 = vld [vmem:[#allocation2 + $0x28] sm:$0xff]
    %v29 = vld [vmem:[#allocation2 + $0x30] sm:$0xff]
    %v30 = vld [vmem:[#allocation2 + $0x38] sm:$0xff]
    %v31 = vld [vmem:[#allocation2 + $0x40] sm:$0xff]
    %v32 = vld [vmem:[#allocation2 + $0x48] sm:$0xff]
    %v33 = vld [vmem:[#allocation2 + $0x50] sm:$0xff]
    %v34 = vld [vmem:[#allocation2 + $0x58] sm:$0xff]
    %v35 = vld [vmem:[#allocation2 + $0x60] sm:$0xff]
    %v36 = vld [vmem:[#allocation2 + $0x68] sm:$0xff]
    %v37 = vld [vmem:[#allocation2 + $0x70] sm:$0xff]
    %v38 = vld [vmem:[#allocation2 + $0x78] sm:$0xff]
    %vm39 = vcmask 130048
    %v40 = vsel %vm39, %v23, 0.0
    %v41 = vsel %vm39, %v24, 0.0
    %v42 = vadd.f32 %v40, %v41
    %v43 = vrot.slane %v42, 4
    %v44 = vadd.f32 %v42, %v43
    %v45 = vrot.slane %v44, 2
    %v46 = vadd.f32 %v44, %v45
    %v47 = vrot.slane %v46, 1
    %v48 = vadd.f32 %v46, %v47
    %v49 = vsel %vm39, %v25, 0.0
    %v50 = vsel %vm39, %v26, 0.0
    %v51 = vadd.f32 %v49, %v50
    %v52 = vrot.slane %v51, 4
    %v53 = vadd.f32 %v51, %v52
    %v54 = vrot.slane %v53, 2
    %v55 = vadd.f32 %v53, %v54
    %v56 = vrot.slane %v55, 1
    %v57 = vadd.f32 %v55, %v56
    %v58 = vsel %vm39, %v27, 0.0
    %v59 = vsel %vm39, %v28, 0.0
    %v60 = vadd.f32 %v58, %v59
    %v61 = vrot.slane %v60, 4
    %v62 = vadd.f32 %v60, %v61
    %v63 = vrot.slane %v62, 2
    %v64 = vadd.f32 %v62, %v63
    %v65 = vrot.slane %v64, 1
    %v66 = vadd.f32 %v64, %v65
    %v67 = vsel %vm39, %v29, 0.0
    %v68 = vsel %vm39, %v30, 0.0
    %v69 = vadd.f32 %v67, %v68
    %v70 = vrot.slane %v69, 4
    %v71 = vadd.f32 %v69, %v70
    %v72 = vrot.slane %v71, 2
    %v73 = vadd.f32 %v71, %v72
    %v74 = vrot.slane %v73, 1
    %v75 = vadd.f32 %v73, %v74
    %v76 = vsel %vm39, %v31, 0.0
    %v77 = vsel %vm39, %v32, 0.0
    %v78 = vadd.f32 %v76, %v77
    %v79 = vrot.slane %v78, 4
    %v80 = vadd.f32 %v78, %v79
    %v81 = vrot.slane %v80, 2
    %v82 = vadd.f32 %v80, %v81
    %v83 = vrot.slane %v82, 1
    %v84 = vadd.f32 %v82, %v83
    %v85 = vsel %vm39, %v33, 0.0
    %v86 = vsel %vm39, %v34, 0.0
    %v87 = vadd.f32 %v85, %v86
    %v88 = vrot.slane %v87, 4
    %v89 = vadd.f32 %v87, %v88
    %v90 = vrot.slane %v89, 2
    %v91 = vadd.f32 %v89, %v90
    %v92 = vrot.slane %v91, 1
    %v93 = vadd.f32 %v91, %v92
    %v94 = vsel %vm39, %v35, 0.0
    %v95 = vsel %vm39, %v36, 0.0
    %v96 = vadd.f32 %v94, %v95
    %v97 = vrot.slane %v96, 4
    %v98 = vadd.f32 %v96, %v97
    %v99 = vrot.slane %v98, 2
    %v100 = vadd.f32 %v98, %v99
    %v101 = vrot.slane %v100, 1
    %v102 = vadd.f32 %v100, %v101
    %v103 = vsel %vm39, %v37, 0.0
    %v104 = vsel %vm39, %v38, 0.0
    %v105 = vadd.f32 %v103, %v104
    %v106 = vrot.slane %v105, 4
    %v107 = vadd.f32 %v105, %v106
    %v108 = vrot.slane %v107, 2
    %v109 = vadd.f32 %v107, %v108
    %v110 = vrot.slane %v109, 1
    %v111 = vadd.f32 %v109, %v110
    %112 = vadd.xlane.f32.xlu0 %v40
    %v113 = vpop.xlane.xlu0 %112
    %114 = vadd.xlane.f32.xlu0 %v41
    %v115 = vpop.xlane.xlu0 %114
    %116 = vadd.xlane.f32.xlu0 %v49
    %v117 = vpop.xlane.xlu0 %116
    %118 = vadd.xlane.f32.xlu0 %v50
    %v119 = vpop.xlane.xlu0 %118
    %120 = vadd.xlane.f32.xlu0 %v58
    %v121 = vpop.xlane.xlu0 %120
    %122 = vadd.xlane.f32.xlu0 %v59
    %v123 = vpop.xlane.xlu0 %122
    %124 = vadd.xlane.f32.xlu0 %v67
    %v125 = vpop.xlane.xlu0 %124
    %126 = vadd.xlane.f32.xlu0 %v68
    %v127 = vpop.xlane.xlu0 %126
    %128 = vadd.xlane.f32.xlu0 %v76
    %v129 = vpop.xlane.xlu0 %128
    %130 = vadd.xlane.f32.xlu0 %v77
    %v131 = vpop.xlane.xlu0 %130
    %132 = vadd.xlane.f32.xlu0 %v85
    %v133 = vpop.xlane.xlu0 %132
    %134 = vadd.xlane.f32.xlu0 %v86
    %v135 = vpop.xlane.xlu0 %134
    %136 = vadd.xlane.f32.xlu0 %v94
    %v137 = vpop.xlane.xlu0 %136
    %138 = vadd.xlane.f32.xlu0 %v95
    %v139 = vpop.xlane.xlu0 %138
    %140 = vadd.xlane.f32.xlu0 %v103
    %v141 = vpop.xlane.xlu0 %140
    %142 = vadd.xlane.f32.xlu0 %v104
    %v143 = vpop.xlane.xlu0 %142
    %v144 = vmul.f32 %v48, 0.0625
    %v145 = vmul.f32 %v57, 0.0625
    %v146 = vmul.f32 %v66, 0.0625
    %v147 = vmul.f32 %v75, 0.0625
    %v148 = vmul.f32 %v84, 0.0625
    %v149 = vmul.f32 %v93, 0.0625
    %v150 = vmul.f32 %v102, 0.0625
    %v151 = vmul.f32 %v111, 0.0625
    %v152 = vmul.f32 %v113, 0.0625
    %v153 = vmul.f32 %v115, 0.0625
    %v154 = vmul.f32 %v117, 0.0625
    %v155 = vmul.f32 %v119, 0.0625
    %v156 = vmul.f32 %v121, 0.0625
    %v157 = vmul.f32 %v123, 0.0625
    %v158 = vmul.f32 %v125, 0.0625
    %v159 = vmul.f32 %v127, 0.0625
    %v160 = vmul.f32 %v129, 0.0625
    %v161 = vmul.f32 %v131, 0.0625
    %v162 = vmul.f32 %v133, 0.0625
    %v163 = vmul.f32 %v135, 0.0625
    %v164 = vmul.f32 %v137, 0.0625
    %v165 = vmul.f32 %v139, 0.0625
    %v166 = vmul.f32 %v141, 0.0625
    %v167 = vmul.f32 %v143, 0.0625
    %vm176 = vcmask 1041409
    %v177 = vsel %vm176, %v145, %v144
    %vm178 = vcmask 1042434
    %v179 = vsel %vm178, %v146, %v177
    %vm180 = vcmask 1043459
    %v181 = vsel %vm180, %v147, %v179
    %vm182 = vcmask 1044484
    %v183 = vsel %vm182, %v148, %v181
    %vm184 = vcmask 1045509
    %v185 = vsel %vm184, %v149, %v183
    %vm186 = vcmask 1046534
    %v187 = vsel %vm186, %v150, %v185
    %vm188 = vcmask 1047559
    %v189 = vsel %vm188, %v151, %v187
    %v207 = vlaneseq
    %v208 = vand.u32 %v207, 127
    %v209 = vadd.s32 %v208, 4294967280
    %v210 = vlaneseq
    %v211 = vshrl.u32 %v210, 7
    %v212 = vsub.s32 %v209, %v211
    %v213 = vrot.slane %v152, %v212
    %v214 = vadd.s32 %v208, 4294967272
    %v215 = vlaneseq
    %v216 = vshrl.u32 %v215, 7
    %v217 = vsub.s32 %v214, %v216
    %v218 = vrot.slane %v153, %v217
    %vm219 = vcmask 261312
    %v220 = vsel %vm219, %v218, %v213
    %v221 = vlaneseq
    %v222 = vshrl.u32 %v221, 7
    %v223 = vsub.s32 %v209, %v222
    %v224 = vrot.slane %v154, %v223
    %v225 = vlaneseq
    %v226 = vshrl.u32 %v225, 7
    %v227 = vsub.s32 %v214, %v226
    %v228 = vrot.slane %v155, %v227
    %v229 = vsel %vm219, %v228, %v224
    %v230 = vlaneseq
    %v231 = vshrl.u32 %v230, 7
    %v232 = vsub.s32 %v209, %v231
    %v233 = vrot.slane %v156, %v232
    %v234 = vlaneseq
    %v235 = vshrl.u32 %v234, 7
    %v236 = vsub.s32 %v214, %v235
    %v237 = vrot.slane %v157, %v236
    %v238 = vsel %vm219, %v237, %v233
    %v239 = vlaneseq
    %v240 = vshrl.u32 %v239, 7
    %v241 = vsub.s32 %v209, %v240
    %v242 = vrot.slane %v158, %v241
    %v243 = vlaneseq
    %v244 = vshrl.u32 %v243, 7
    %v245 = vsub.s32 %v214, %v244
    %v246 = vrot.slane %v159, %v245
    %v247 = vsel %vm219, %v246, %v242
    %v248 = vlaneseq
    %v249 = vshrl.u32 %v248, 7
    %v250 = vsub.s32 %v209, %v249
    %v251 = vrot.slane %v160, %v250
    %v252 = vlaneseq
    %v253 = vshrl.u32 %v252, 7
    %v254 = vsub.s32 %v214, %v253
    %v255 = vrot.slane %v161, %v254
    %v256 = vsel %vm219, %v255, %v251
    %v257 = vlaneseq
    %v258 = vshrl.u32 %v257, 7
    %v259 = vsub.s32 %v209, %v258
    %v260 = vrot.slane %v162, %v259
    %v261 = vlaneseq
    %v262 = vshrl.u32 %v261, 7
    %v263 = vsub.s32 %v214, %v262
    %v264 = vrot.slane %v163, %v263
    %v265 = vsel %vm219, %v264, %v260
    %v266 = vlaneseq
    %v267 = vshrl.u32 %v266, 7
    %v268 = vsub.s32 %v209, %v267
    %v269 = vrot.slane %v164, %v268
    %v270 = vlaneseq
    %v271 = vshrl.u32 %v270, 7
    %v272 = vsub.s32 %v214, %v271
    %v273 = vrot.slane %v165, %v272
    %v274 = vsel %vm219, %v273, %v269
    %v275 = vlaneseq
    %v276 = vshrl.u32 %v275, 7
    %v277 = vsub.s32 %v209, %v276
    %v278 = vrot.slane %v166, %v277
    %v279 = vlaneseq
    %v280 = vshrl.u32 %v279, 7
    %v281 = vsub.s32 %v214, %v280
    %v282 = vrot.slane %v167, %v281
    %v283 = vsel %vm219, %v282, %v278
    %v284 = vsel %vm176, %v229, %v220
    %v285 = vsel %vm178, %v238, %v284
    %v286 = vsel %vm180, %v247, %v285
    %v287 = vsel %vm182, %v256, %v286
    %v288 = vsel %vm184, %v265, %v287
    %v289 = vsel %vm186, %v274, %v288
    %v290 = vsel %vm188, %v283, %v289
    %v292 = vsel %vm39, %v189, %v290
    %vm293 = vcmask 261120
    %294 = vst.msk [vmem:[#allocation5] sm:$0xff] %vm293, %v292
    // Predicated region
    $region10: #{tpu_custom_call.1} parent=1 // pred_check
      _
    $region11: #{tpu_custom_call.1} parent=1 // pred_check_branch
      %296 = sbr.rel (0) target = $region13
    $region12: #{tpu_custom_call.1} parent=1 // pred_region
      %s298 = ssub.s32 128, 128
      %299 = vsyncadd [#allocation4], %s298
      %s301 = sshll.u32 [#allocation5], 4
      %s302 = int_to_ptr.vmem [resolvable:$true] %s301
      %304 = dma.vmem_to_hbm [thread:$0]  %s302, 128, %s1, [#allocation4]
    $region13: #{tpu_custom_call.1} parent=1 // pred_fallthru
      _
    // Predicated region
    $region14: #{tpu_custom_call.1} parent=1 // pred_check
      _
    $region15: #{tpu_custom_call.1} parent=1 // pred_check_branch
      %306 = sbr.rel (0) target = $region17
    $region16: #{tpu_custom_call.1} parent=1 // pred_region
      %307 = dma.done [#allocation4], 128
    $region17: #{tpu_custom_call.1} parent=1 // pred_fallthru
      _
    %308 = vsyncpa [#allocation3], 1
    %309 = vsyncpa [#allocation4], 1

</llo_original>
